<compile_context>
chip_gen: v7x
topology: tpu7x:2x2x1
jax: 0.10.0
libtpu: 0.0.40
codegen_flags: <defaults>
</compile_context>

<pallas_src>
import jax
import jax.numpy as jnp
from jax.experimental import pallas as pl
from jax.experimental.pallas import tpu as pltpu

INPUT_DIM = 11
HIDDEN_DIM = 64
OUTPUT_FEATURES = 10
OUT_DIM = 3 * OUTPUT_FEATURES  # 30

LANES = 128
ROW_ALIGN = 16                 # bf16 sublane packing: rows travel in pairs of 8
DEFAULT_TM = 256               # batched LHS tile (v6e/v7x sweet spot; fine on v5e)


def _round_up(n, m):
    return ((n + m - 1) // m) * m


def phinet_kernel(x_ref, w_ref, b_ref, o_ref):
    # x_ref: [TM, 128]     bf16  (rows = batch tile; lanes 0:11 real, rest zero)
    # w_ref: [3, 128, 128] bf16  (zero-padded fc1/fc2/fc3 weights, stored [in, out])
    # b_ref: [3, 128]      f32   (zero-padded b1/b2/b3)
    # o_ref: [TM, 128]     f32   (lanes 0:30 = fc3 output)
    h = jnp.dot(x_ref[...], w_ref[0], preferred_element_type=jnp.float32)
    h = jnp.maximum(h + b_ref[0:1, :], 0.0)                       # fc1 + relu (f32)

    h = jnp.dot(h.astype(jnp.bfloat16), w_ref[1], preferred_element_type=jnp.float32)
    h = jnp.maximum(h + b_ref[1:2, :], 0.0)                       # fc2 + relu (f32)

    h = jnp.dot(h.astype(jnp.bfloat16), w_ref[2], preferred_element_type=jnp.float32)
    o_ref[...] = h + b_ref[2:3, :]                                # fc3 (f32)


def pack_params(params):
    """Coalesce (w1,b1,w2,b2,w3,b3) into one bf16 weight slab + one f32 bias slab."""
    w1, b1, w2, b2, w3, b3 = params
    W = jnp.zeros((3, LANES, LANES), jnp.bfloat16)
    W = W.at[0, :INPUT_DIM, :HIDDEN_DIM].set(w1.astype(jnp.bfloat16))
    W = W.at[1, :HIDDEN_DIM, :HIDDEN_DIM].set(w2.astype(jnp.bfloat16))
    W = W.at[2, :HIDDEN_DIM, :OUT_DIM].set(w3.astype(jnp.bfloat16))
    B = jnp.zeros((3, LANES), jnp.float32)
    B = B.at[0, :HIDDEN_DIM].set(b1[0])
    B = B.at[1, :HIDDEN_DIM].set(b2[0])
    B = B.at[2, :OUT_DIM].set(b3[0])
    return W, B


def phinet_forward_batch(x, packed, *, tm=DEFAULT_TM):
    """x: [B, INPUT_DIM] f32 -> [B, OUT_DIM] f32 (batched PhiNet body, no .view glue)."""
    W, B = packed
    n = x.shape[0]
    # Shrink the row tile for tiny batches so B=1 doesn't pay for a 256-row tile.
    tm = max(ROW_ALIGN, min(tm, _round_up(n, ROW_ALIGN)))
    bp = _round_up(n, tm)

    # Pre-pad + pre-cast to bf16 outside the kernel: one lane-dense packed slab, no
    # in-kernel cast, half-size x DMA.
    x_pad = jnp.zeros((bp, LANES), jnp.bfloat16)
    x_pad = x_pad.at[:n, :INPUT_DIM].set(x.astype(jnp.bfloat16))

    out = pl.pallas_call(
        phinet_kernel,
        out_shape=jax.ShapeDtypeStruct((bp, LANES), jnp.float32),
        grid=(bp // tm,),
        in_specs=[
            pl.BlockSpec((tm, LANES), lambda i: (i, 0)),
            # Constant index_maps: the weight/bias slabs are DMA'd once and stay
            # VMEM-resident across all row-tile grid steps.
            pl.BlockSpec((3, LANES, LANES), lambda i: (0, 0, 0)),
            pl.BlockSpec((3, LANES), lambda i: (0, 0)),
        ],
        out_specs=pl.BlockSpec((tm, LANES), lambda i: (i, 0)),
        compiler_params=pltpu.CompilerParams(
            dimension_semantics=("parallel",),
        ),
    )(x_pad, W, B)
    return out[:n, :OUT_DIM]


def phinet_forward(x, packed):
    """Module-equivalent forward: x [1, INPUT_DIM] -> [3, OUTPUT_FEATURES] (torch .view)."""
    x = x.reshape(1, INPUT_DIM)
    out = phinet_forward_batch(x, packed)
    # torch's x.view(3, output_features): pure reshape glue, done in the wrapper.
    return out[0].reshape(3, OUTPUT_FEATURES)


def init_params(key):
    """Deterministic init matching nn.Linear's U(-1/sqrt(fan_in), 1/sqrt(fan_in))."""
    def linear(key, fan_in, fan_out):
        kw, kb = jax.random.split(key)
        bound = 1.0 / jnp.sqrt(jnp.float32(fan_in))
        # Stored as [in, out] so the kernel does x @ w directly.
        w = jax.random.uniform(kw, (fan_in, fan_out), jnp.float32, -bound, bound)
        b = jax.random.uniform(kb, (1, fan_out), jnp.float32, -bound, bound)
        return w, b

    k1, k2, k3 = jax.random.split(key, 3)
    w1, b1 = linear(k1, INPUT_DIM, HIDDEN_DIM)
    w2, b2 = linear(k2, HIDDEN_DIM, HIDDEN_DIM)
    w3, b3 = linear(k3, HIDDEN_DIM, OUT_DIM)
    return (w1, b1, w2, b2, w3, b3)


if __name__ == "__main__":
    key = jax.random.PRNGKey(0)
    k_params, k_x1, k_xb = jax.random.split(key, 3)

    params = init_params(k_params)
    packed = pack_params(params)
    w1, b1, w2, b2, w3, b3 = params

    def ref_bf16(xs):
        # Same bf16-operand / f32-accumulate math as the kernel (tight check).
        xb = xs.astype(jnp.bfloat16)
        h = jnp.maximum(
            jnp.dot(xb, w1.astype(jnp.bfloat16), preferred_element_type=jnp.float32) + b1, 0.0)
        h = jnp.maximum(
            jnp.dot(h.astype(jnp.bfloat16), w2.astype(jnp.bfloat16),
                    preferred_element_type=jnp.float32) + b2, 0.0)
        return jnp.dot(h.astype(jnp.bfloat16), w3.astype(jnp.bfloat16),
                       preferred_element_type=jnp.float32) + b3

    def ref_f32(xs):
        # Full-f32 PyTorch-equivalent path (loose check, bf16 operand rounding).
        h = jnp.maximum(xs @ w1 + b1, 0.0)
        h = jnp.maximum(h @ w2 + b2, 0.0)
        return h @ w3 + b3

    # --- single-sample, module-equivalent forward (implies x: [1, 11], out: (3, 10)) ---
    x1 = jax.random.normal(k_x1, (1, INPUT_DIM), jnp.float32)
    out1 = jax.block_until_ready(jax.jit(phinet_forward)(x1, packed))
    assert out1.shape == (3, OUTPUT_FEATURES), out1.shape
    assert jnp.allclose(out1, ref_bf16(x1).reshape(3, OUTPUT_FEATURES),
                        atol=1e-2, rtol=1e-2), "single-sample bf16-ref mismatch"
    assert jnp.allclose(out1, ref_f32(x1).reshape(3, OUTPUT_FEATURES),
                        atol=5e-2, rtol=5e-2), "single-sample f32-ref mismatch"

    # --- batched forward: 300 rows -> padded to 512, 2 grid steps of TM=256,
    #     weight slab DMA'd once and VMEM-resident, row-tile axis "parallel" ---
    BATCH = 300
    xb = jax.random.normal(k_xb, (BATCH, INPUT_DIM), jnp.float32)
    outb = jax.block_until_ready(jax.jit(phinet_forward_batch)(xb, packed))
    assert outb.shape == (BATCH, OUT_DIM), outb.shape
    assert jnp.allclose(outb, ref_bf16(xb), atol=1e-2, rtol=1e-2), "batched bf16-ref mismatch"
    assert jnp.allclose(outb, ref_f32(xb), atol=1e-1, rtol=1e-1), "batched f32-ref mismatch"

    print("KERNEL_OK")
</pallas_src>

<mosaic_0001>
module attributes {stable_mosaic.version = 11 : i64} {
  func.func @phinet_kernel(%arg0: i32, %arg1: memref<16x128xbf16, #tpu.memory_space<vmem>>, %arg2: memref<3x128x128xbf16, #tpu.memory_space<vmem>>, %arg3: memref<3x128xf32, #tpu.memory_space<vmem>>, %arg4: memref<16x128xf32, #tpu.memory_space<vmem>>) attributes {dimension_semantics = [#tpu.dimension_semantics<parallel>], iteration_bounds = array<i64: 1>, scalar_prefetch = 0 : i64, scratch_operands = 0 : i64, tpu.core_type = #tpu.core_type<tc>, window_params = [{transform_indices = @transform_0, window_bounds = array<i64: 16, 128>}, {pipeline_mode = #tpu.pipeline_mode<synchronous>, transform_indices = @transform_1, window_bounds = array<i64: 3, 128, 128>}, {pipeline_mode = #tpu.pipeline_mode<synchronous>, transform_indices = @transform_2, window_bounds = array<i64: 3, 128>}, {transform_indices = @transform_3, window_bounds = array<i64: 16, 128>}]} {
    %c0 = arith.constant 0 : index
    %c0_0 = arith.constant 0 : index
    %0 = vector.load %arg1[%c0, %c0_0] : memref<16x128xbf16, #tpu.memory_space<vmem>>, vector<16x128xbf16>
    %c0_1 = arith.constant 0 : index
    %c0_2 = arith.constant 0 : index
    %c0_3 = arith.constant 0 : index
    %1 = vector.load %arg2[%c0_1, %c0_2, %c0_3] : memref<3x128x128xbf16, #tpu.memory_space<vmem>>, vector<1x128x128xbf16>
    %2 = vector.shape_cast %1 : vector<1x128x128xbf16> to vector<128x128xbf16>
    %cst = arith.constant dense<0.000000e+00> : vector<16x128xf32>
    %3 = tpu.matmul %0, %2, %cst {dimension_numbers = #tpu.dot_dimension_numbers<[1], [0], [0], [1], [0, 0, 1, 1], [], []>} : vector<16x128xbf16>, vector<128x128xbf16>, vector<16x128xf32> -> vector<16x128xf32>
    %c0_4 = arith.constant 0 : index
    %c0_5 = arith.constant 0 : index
    %4 = vector.load %arg3[%c0_4, %c0_5] : memref<3x128xf32, #tpu.memory_space<vmem>>, vector<1x128xf32>
    %5 = vector.broadcast %4 : vector<1x128xf32> to vector<16x128xf32>
    %6 = arith.addf %3, %5 : vector<16x128xf32>
    %cst_6 = arith.constant 0.000000e+00 : f32
    %7 = vector.broadcast %cst_6 : f32 to vector<16x128xf32>
    %8 = arith.maximumf %6, %7 : vector<16x128xf32>
    %9 = arith.truncf %8 : vector<16x128xf32> to vector<16x128xbf16>
    %c1 = arith.constant 1 : index
    %c0_7 = arith.constant 0 : index
    %c0_8 = arith.constant 0 : index
    %10 = vector.load %arg2[%c1, %c0_7, %c0_8] : memref<3x128x128xbf16, #tpu.memory_space<vmem>>, vector<1x128x128xbf16>
    %11 = vector.shape_cast %10 : vector<1x128x128xbf16> to vector<128x128xbf16>
    %cst_9 = arith.constant dense<0.000000e+00> : vector<16x128xf32>
    %12 = tpu.matmul %9, %11, %cst_9 {dimension_numbers = #tpu.dot_dimension_numbers<[1], [0], [0], [1], [0, 0, 1, 1], [], []>} : vector<16x128xbf16>, vector<128x128xbf16>, vector<16x128xf32> -> vector<16x128xf32>
    %c1_10 = arith.constant 1 : index
    %c0_11 = arith.constant 0 : index
    %13 = vector.load %arg3[%c1_10, %c0_11] : memref<3x128xf32, #tpu.memory_space<vmem>>, vector<1x128xf32>
    %14 = vector.broadcast %13 : vector<1x128xf32> to vector<16x128xf32>
    %15 = arith.addf %12, %14 : vector<16x128xf32>
    %cst_12 = arith.constant 0.000000e+00 : f32
    %16 = vector.broadcast %cst_12 : f32 to vector<16x128xf32>
    %17 = arith.maximumf %15, %16 : vector<16x128xf32>
    %18 = arith.truncf %17 : vector<16x128xf32> to vector<16x128xbf16>
    %c2 = arith.constant 2 : index
    %c0_13 = arith.constant 0 : index
    %c0_14 = arith.constant 0 : index
    %19 = vector.load %arg2[%c2, %c0_13, %c0_14] : memref<3x128x128xbf16, #tpu.memory_space<vmem>>, vector<1x128x128xbf16>
    %20 = vector.shape_cast %19 : vector<1x128x128xbf16> to vector<128x128xbf16>
    %cst_15 = arith.constant dense<0.000000e+00> : vector<16x128xf32>
    %21 = tpu.matmul %18, %20, %cst_15 {dimension_numbers = #tpu.dot_dimension_numbers<[1], [0], [0], [1], [0, 0, 1, 1], [], []>} : vector<16x128xbf16>, vector<128x128xbf16>, vector<16x128xf32> -> vector<16x128xf32>
    %c2_16 = arith.constant 2 : index
    %c0_17 = arith.constant 0 : index
    %22 = vector.load %arg3[%c2_16, %c0_17] : memref<3x128xf32, #tpu.memory_space<vmem>>, vector<1x128xf32>
    %23 = vector.broadcast %22 : vector<1x128xf32> to vector<16x128xf32>
    %24 = arith.addf %21, %23 : vector<16x128xf32>
    %c0_18 = arith.constant 0 : index
    %c0_19 = arith.constant 0 : index
    %25 = vector.load %arg4[%c0_18, %c0_19] : memref<16x128xf32, #tpu.memory_space<vmem>>, vector<16x128xf32>
    tpu.vector_store %arg4[%c0_18, %c0_19], %24 {strides = array<i32>} : memref<16x128xf32, #tpu.memory_space<vmem>>, vector<16x128xf32>,
    return
  }
  func.func @transform_0(%arg0: i32) -> (i32, i32) {
    %c0_i32 = arith.constant 0 : i32
    %c0_i32_0 = arith.constant 0 : i32
    return %arg0, %c0_i32 : i32, i32
  }
  func.func @transform_1(%arg0: i32) -> (i32, i32, i32) {
    %c0_i32 = arith.constant 0 : i32
    %c0_i32_0 = arith.constant 0 : i32
    %c0_i32_1 = arith.constant 0 : i32
    %c0_i32_2 = arith.constant 0 : i32
    return %c0_i32, %c0_i32_0, %c0_i32_1 : i32, i32, i32
  }
  func.func @transform_2(%arg0: i32) -> (i32, i32) {
    %c0_i32 = arith.constant 0 : i32
    %c0_i32_0 = arith.constant 0 : i32
    %c0_i32_1 = arith.constant 0 : i32
    return %c0_i32, %c0_i32_0 : i32, i32
  }
  func.func @transform_3(%arg0: i32) -> (i32, i32) {
    %c0_i32 = arith.constant 0 : i32
    %c0_i32_0 = arith.constant 0 : i32
    return %arg0, %c0_i32 : i32, i32
  }
}

</mosaic_0001>

<llo_original>
// kernel: squeeze.1
$region0: #{squeeze.1}
  %s0 = inlined_call_operand.vmem [shape: f32[30], index: 0, kind: input, shape index: {}]
  %s1 = inlined_call_operand.hbm [shape: f32[3,10], index: 1, kind: output, shape index: {}]
  $region1: #{squeeze.1} parent=0
    #allocation0 [shape = 'u8[2048]{0}', space=vmem, size = 0x800, scoped, tag = 'operand span for operand 1']
    #allocation1 [shape = 's32[1]{0}', space=sflag, size = 0x4, scoped, tag = 'scoped memory for squeeze.1']
    #allocation2 [shape = 'u8[4096]{0}', space=vmem, size = 0x1000, scoped, tag = 'scoped mem for output reshape']
    #allocation3 [shape = 'u8[4096]{0}', space=vmem, size = 0x1000, scoped, tag = 'scoped mem for input reshape']
    %2 = vsyncpa [#allocation1], 0
    %s4 = sshllo.u32 0, 1
    %v5 = vld [vmem:[%s0] sm:%s4]
    %6 = vst [vmem:[#allocation3] sm:%s4] %v5
    %v7 = vld [vmem:[#allocation3] sm:$0x1]
    %vm8 = vcmask 80896
    %9 = vst.msk [vmem:[#allocation2] sm:$0x1] %vm8, %v7
    %v10 = vld [vmem:[#allocation3] sm:$0x1]
    %11 = vrot.lane.b32.xlu0 %v10, 118
    %v12 = vpop.permute.xlu0 %11
    %vm13 = vcmask 80896
    %s14 = scalar_lea.vmem [#allocation2], 1
    %15 = vst.msk [vmem:[%s14] sm:$0x1] %vm13, %v12
    %v16 = vld [vmem:[#allocation3] sm:$0x1]
    %17 = vrot.lane.b32.xlu0 %v16, 108
    %v18 = vpop.permute.xlu0 %17
    %vm19 = vcmask 80896
    %s20 = scalar_lea.vmem [#allocation2], 2
    %21 = vst.msk [vmem:[%s20] sm:$0x1] %vm19, %v18
    %s23 = sshllo.u32 0, 4
    %v25 = vld [vmem:[#allocation2] sm:%s23]
    %s26 = sshllo.u32 0, 4
    %27 = vst [vmem:[#allocation0] sm:%s26] %v25
    %s29 = ssub.s32 64, 64
    %30 = vsyncadd [#allocation1], %s29
    %s32 = sshll.u32 [#allocation0], 4
    %s33 = int_to_ptr.vmem [resolvable:$true] %s32
    %35 = dma.vmem_to_hbm [thread:$0]  %s33, 64, %s1, [#allocation1]
    %36 = dma.done [#allocation1], 64
    %37 = vsyncpa [#allocation1], 1

// kernel: phinet_forward.1
$region0: #{phinet_forward.1}
  #allocation0 [shape = 'u32[]', space=smem, size = 0x4, offset = 0x4, fixed_abs, tag = 'smem constant byte address 0x4 - core index']
  #allocation1 [shape = 'u32[144,128]{1,0:T(1,128)}', space=vmem, size = 0x12000, scoped, tag = 'internal scratch']
  %s0 = inlined_call_operand.vmem [shape: bf16[16,128], index: 0, kind: input, shape index: {}]
  %s1 = inlined_call_operand.hbm [shape: bf16[3,128,128], index: 1, kind: input, shape index: {}]
  %s2 = inlined_call_operand.vmem [shape: f32[3,128], index: 2, kind: input, shape index: {}]
  %s3 = inlined_call_operand.vmem [shape: f32[16,128], index: 3, kind: output, shape index: {}]
  %s4 = sld [smem:[#allocation0]]
  $region26: #{phinet_forward.1} parent=0
    _
  %s6 = ssub.s32 1, %s4
  %s7 = scalar_select 0, %s6, %s4
  $region1: #{phinet_forward.1} parent=0
    #allocation2 [shape = 'u8[98304]{0}', space=vmem, size = 0x18000, scoped, tag = 'input window, operand 1, single buffered']
    #allocation3 [shape = 's32[1]{0}', space=sflag, size = 0x4, scoped, tag = 'scoped memory for phinet_forward.1']
    %8 = vsyncpa [#allocation3], 0
    // Predicated region
    $region2: #{phinet_forward.1} parent=1 // pred_check
      _
    $region3: #{phinet_forward.1} parent=1 // pred_check_branch
      %10 = sbr.rel (0) target = $region5
    $region4: #{phinet_forward.1} parent=1 // pred_region
      _
    $region5: #{phinet_forward.1} parent=1 // pred_fallthru
      _
    // Predicated region
    $region6: #{phinet_forward.1} parent=1 // pred_check
      _
    $region7: #{phinet_forward.1} parent=1 // pred_check_branch
      %12 = sbr.rel (0) target = $region9
    $region8: #{phinet_forward.1} parent=1 // pred_region
      %s14 = ssub.s32 3072, 3072
      %15 = vsyncadd [#allocation3], %s14
      %s16 = sshll.u32 [#allocation2], 4
      %s17 = int_to_ptr.vmem [resolvable:$true] %s16
      %22 = dma.hbm_to_vmem [thread:$0]  %s1, 3072, %s17, [#allocation3], 64, 64, 4
    $region9: #{phinet_forward.1} parent=1 // pred_fallthru
      _
    // Predicated region
    $region10: #{phinet_forward.1} parent=1 // pred_check
      _
    $region11: #{phinet_forward.1} parent=1 // pred_check_branch
      %24 = sbr.rel (0) target = $region13
    $region12: #{phinet_forward.1} parent=1 // pred_region
      _
    $region13: #{phinet_forward.1} parent=1 // pred_fallthru
      _
    // Predicated region
    $region14: #{phinet_forward.1} parent=1 // pred_check
      _
    $region15: #{phinet_forward.1} parent=1 // pred_check_branch
      %26 = sbr.rel (0) target = $region17
    $region16: #{phinet_forward.1} parent=1 // pred_region
      %27 = dma.done [#allocation3], 3072
    $region17: #{phinet_forward.1} parent=1 // pred_fallthru
      _
    %v29 = vld [vmem:[%s0] sm:$0xf]
    %v30 = vld [vmem:[%s0 + $0x4] sm:$0xf]
    %v31 = vld [vmem:[#allocation2] sm:$0xf]
    %v32 = vld [vmem:[#allocation2 + $0x4] sm:$0xf]
    %v33 = vld [vmem:[#allocation2 + $0x8] sm:$0xf]
    %v34 = vld [vmem:[#allocation2 + $0xc] sm:$0xf]
    %v35 = vld [vmem:[#allocation2 + $0x10] sm:$0xf]
    %v36 = vld [vmem:[#allocation2 + $0x14] sm:$0xf]
    %v37 = vld [vmem:[#allocation2 + $0x18] sm:$0xf]
    %v38 = vld [vmem:[#allocation2 + $0x1c] sm:$0xf]
    %v39 = vld [vmem:[#allocation2 + $0x20] sm:$0xf]
    %v40 = vld [vmem:[#allocation2 + $0x24] sm:$0xf]
    %v41 = vld [vmem:[#allocation2 + $0x28] sm:$0xf]
    %v42 = vld [vmem:[#allocation2 + $0x2c] sm:$0xf]
    %v43 = vld [vmem:[#allocation2 + $0x30] sm:$0xf]
    %v44 = vld [vmem:[#allocation2 + $0x34] sm:$0xf]
    %v45 = vld [vmem:[#allocation2 + $0x38] sm:$0xf]
    %v46 = vld [vmem:[#allocation2 + $0x3c] sm:$0xf]
    %v47 = vld [vmem:[%s2] sm:$0x1]
    %v48 = vlaneseq
    %v49 = vshrl.u32 %v48, 7
    %v50 = vsub.s32 0, %v49
    %v51 = vrot.slane %v47, %v50
    %v54 = vunpack.c.l.b16 %v29
    %v55 = vunpack.c.l.b16 %v30
    %v56 = vpack.c.b16 %v55, %v54
    %v74 = vunpack.c.l.b16 %v31
    %v75 = vunpack.c.l.b16 %v32
    %v76 = vunpack.c.l.b16 %v33
    %v77 = vunpack.c.l.b16 %v34
    %v78 = vunpack.c.l.b16 %v35
    %v79 = vunpack.c.l.b16 %v36
    %v80 = vunpack.c.l.b16 %v37
    %v81 = vunpack.c.l.b16 %v38
    %v82 = vunpack.c.l.b16 %v39
    %v83 = vunpack.c.l.b16 %v40
    %v84 = vunpack.c.l.b16 %v41
    %v85 = vunpack.c.l.b16 %v42
    %v86 = vunpack.c.l.b16 %v43
    %v87 = vunpack.c.l.b16 %v44
    %v88 = vunpack.c.l.b16 %v45
    %v89 = vunpack.c.l.b16 %v46
    %v90 = vpack.c.b16 %v75, %v74
    %v91 = vpack.c.b16 %v77, %v76
    %v92 = vpack.c.b16 %v79, %v78
    %v93 = vpack.c.b16 %v81, %v80
    %v94 = vpack.c.b16 %v83, %v82
    %v95 = vpack.c.b16 %v85, %v84
    %v96 = vpack.c.b16 %v87, %v86
    %v97 = vpack.c.b16 %v89, %v88
    %106 = vmatprep.subr.bf16.mxu0 0
    %107 = vmatpush1.bf16.msra.mxu0 %v90
    %108 = vmatprep.subr.bf16.mxu0 0
    %109 = vmatpush1.bf16.msra.mxu0 %v91
    %110 = vmatprep.subr.bf16.mxu0 0
    %111 = vmatpush1.bf16.msra.mxu0 %v92
    %112 = vmatprep.subr.bf16.mxu0 0
    %113 = vmatpush1.bf16.msra.mxu0 %v93
    %114 = vmatprep.subr.bf16.mxu0 0
    %115 = vmatpush1.bf16.msra.mxu0 %v94
    %116 = vmatprep.subr.bf16.mxu0 0
    %117 = vmatpush1.bf16.msra.mxu0 %v95
    %118 = vmatprep.subr.bf16.mxu0 0
    %119 = vmatpush1.bf16.msra.mxu0 %v96
    %120 = vmatprep.subr.bf16.mxu0 0
    %121 = vmatpush1.bf16.msra.mxu0 %v97
    %122 = vmatprep.subr.bf16.mxu0 0
    %123 = vmatpush1.bf16.msra.mxu0 0
    %124 = vmatprep.subr.bf16.mxu0 0
    %125 = vmatpush1.bf16.msra.mxu0 0
    %126 = vmatprep.subr.bf16.mxu0 0
    %127 = vmatpush1.bf16.msra.mxu0 0
    %128 = vmatprep.subr.bf16.mxu0 0
    %129 = vmatpush1.bf16.msra.mxu0 0
    %130 = vmatprep.subr.bf16.mxu0 0
    %131 = vmatpush1.bf16.msra.mxu0 0
    %132 = vmatprep.subr.bf16.mxu0 0
    %133 = vmatpush1.bf16.msra.mxu0 0
    %134 = vmatprep.subr.bf16.mxu0 0
    %135 = vmatpush1.bf16.msra.mxu0 0
    %136 = vmatprep.subr.bf16.mxu0 0
    %137 = vmatpush1.bf16.msra.mxu0 0
    %138 = vmatprep.mubr.bf16.mxu0 0
    %139 = vmatmul.mubr.bf16.gmra.mrb[0].mxu0 %v56
    %v140 = vpop.f32.mrb[0].mxu0
    %v141 = vadd.f32 %v51, %v140
    %v142 = vpop.f32.mrb[0].mxu0
    %v143 = vpop.f32.mrb[0].mxu0
    %v144 = vadd.f32 %v51, %v143
    %v145 = vpop.f32.mrb[0].mxu0
    %146 = vdwg.mxu0
    %v147 = vmax.f32 %v141, 0.0
    %v148 = vmax.f32 %v144, 0.0
    %v149 = vpack.c.bf16 %v148, %v147
    %s150 = scalar_lea.vmem [#allocation2], 64
    %v151 = vld [vmem:[%s150] sm:$0xf]
    %v152 = vld [vmem:[%s150 + $0x4] sm:$0xf]
    %v153 = vld [vmem:[%s150 + $0x8] sm:$0xf]
    %v154 = vld [vmem:[%s150 + $0xc] sm:$0xf]
    %v155 = vld [vmem:[%s150 + $0x10] sm:$0xf]
    %v156 = vld [vmem:[%s150 + $0x14] sm:$0xf]
    %v157 = vld [vmem:[%s150 + $0x18] sm:$0xf]
    %v158 = vld [vmem:[%s150 + $0x1c] sm:$0xf]
    %v159 = vld [vmem:[%s150 + $0x20] sm:$0xf]
    %v160 = vld [vmem:[%s150 + $0x24] sm:$0xf]
    %v161 = vld [vmem:[%s150 + $0x28] sm:$0xf]
    %v162 = vld [vmem:[%s150 + $0x2c] sm:$0xf]
    %v163 = vld [vmem:[%s150 + $0x30] sm:$0xf]
    %v164 = vld [vmem:[%s150 + $0x34] sm:$0xf]
    %v165 = vld [vmem:[%s150 + $0x38] sm:$0xf]
    %v166 = vld [vmem:[%s150 + $0x3c] sm:$0xf]
    %v167 = vld [vmem:[%s2 + $0x1] sm:$0x1]
    %v168 = vlaneseq
    %v169 = vshrl.u32 %v168, 7
    %v170 = vsub.s32 0, %v169
    %v171 = vrot.slane %v167, %v170
    %v188 = vunpack.c.l.b16 %v151
    %v189 = vunpack.c.l.b16 %v152
    %v190 = vunpack.c.l.b16 %v153
    %v191 = vunpack.c.l.b16 %v154
    %v192 = vunpack.c.l.b16 %v155
    %v193 = vunpack.c.l.b16 %v156
    %v194 = vunpack.c.l.b16 %v157
    %v195 = vunpack.c.l.b16 %v158
    %v196 = vunpack.c.l.b16 %v159
    %v197 = vunpack.c.l.b16 %v160
    %v198 = vunpack.c.l.b16 %v161
    %v199 = vunpack.c.l.b16 %v162
    %v200 = vunpack.c.l.b16 %v163
    %v201 = vunpack.c.l.b16 %v164
    %v202 = vunpack.c.l.b16 %v165
    %v203 = vunpack.c.l.b16 %v166
    %v204 = vpack.c.b16 %v189, %v188
    %v205 = vpack.c.b16 %v191, %v190
    %v206 = vpack.c.b16 %v193, %v192
    %v207 = vpack.c.b16 %v195, %v194
    %v208 = vpack.c.b16 %v197, %v196
    %v209 = vpack.c.b16 %v199, %v198
    %v210 = vpack.c.b16 %v201, %v200
    %v211 = vpack.c.b16 %v203, %v202
    %220 = vmatprep.subr.bf16.mxu0 0
    %221 = vmatpush1.bf16.msra.mxu0 %v204
    %222 = vmatprep.subr.bf16.mxu0 0
    %223 = vmatpush1.bf16.msra.mxu0 %v205
    %224 = vmatprep.subr.bf16.mxu0 0
    %225 = vmatpush1.bf16.msra.mxu0 %v206
    %226 = vmatprep.subr.bf16.mxu0 0
    %227 = vmatpush1.bf16.msra.mxu0 %v207
    %228 = vmatprep.subr.bf16.mxu0 0
    %229 = vmatpush1.bf16.msra.mxu0 %v208
    %230 = vmatprep.subr.bf16.mxu0 0
    %231 = vmatpush1.bf16.msra.mxu0 %v209
    %232 = vmatprep.subr.bf16.mxu0 0
    %233 = vmatpush1.bf16.msra.mxu0 %v210
    %234 = vmatprep.subr.bf16.mxu0 0
    %235 = vmatpush1.bf16.msra.mxu0 %v211
    %236 = vmatprep.subr.bf16.mxu0 0
    %237 = vmatpush1.bf16.msra.mxu0 0
    %238 = vmatprep.subr.bf16.mxu0 0
    %239 = vmatpush1.bf16.msra.mxu0 0
    %240 = vmatprep.subr.bf16.mxu0 0
    %241 = vmatpush1.bf16.msra.mxu0 0
    %242 = vmatprep.subr.bf16.mxu0 0
    %243 = vmatpush1.bf16.msra.mxu0 0
    %244 = vmatprep.subr.bf16.mxu0 0
    %245 = vmatpush1.bf16.msra.mxu0 0
    %246 = vmatprep.subr.bf16.mxu0 0
    %247 = vmatpush1.bf16.msra.mxu0 0
    %248 = vmatprep.subr.bf16.mxu0 0
    %249 = vmatpush1.bf16.msra.mxu0 0
    %250 = vmatprep.subr.bf16.mxu0 0
    %251 = vmatpush1.bf16.msra.mxu0 0
    %252 = vmatprep.mubr.bf16.mxu0 0
    %253 = vmatmul.mubr.bf16.gmra.mrb[0].mxu0 %v149
    %v254 = vpop.f32.mrb[0].mxu0
    %v255 = vadd.f32 %v171, %v254
    %v256 = vpop.f32.mrb[0].mxu0
    %v257 = vpop.f32.mrb[0].mxu0
    %v258 = vadd.f32 %v171, %v257
    %v259 = vpop.f32.mrb[0].mxu0
    %260 = vdwg.mxu0
    %v261 = vmax.f32 %v255, 0.0
    %v262 = vmax.f32 %v258, 0.0
    %v263 = vpack.c.bf16 %v262, %v261
    %s264 = scalar_lea.vmem [#allocation2], 128
    %v265 = vld [vmem:[%s264] sm:$0xf]
    %v266 = vld [vmem:[%s264 + $0x4] sm:$0xf]
    %v267 = vld [vmem:[%s264 + $0x8] sm:$0xf]
    %v268 = vld [vmem:[%s264 + $0xc] sm:$0xf]
    %v269 = vld [vmem:[%s264 + $0x10] sm:$0xf]
    %v270 = vld [vmem:[%s264 + $0x14] sm:$0xf]
    %v271 = vld [vmem:[%s264 + $0x18] sm:$0xf]
    %v272 = vld [vmem:[%s264 + $0x1c] sm:$0xf]
    %v273 = vld [vmem:[%s264 + $0x20] sm:$0xf]
    %v274 = vld [vmem:[%s264 + $0x24] sm:$0xf]
    %v275 = vld [vmem:[%s264 + $0x28] sm:$0xf]
    %v276 = vld [vmem:[%s264 + $0x2c] sm:$0xf]
    %v277 = vld [vmem:[%s264 + $0x30] sm:$0xf]
    %v278 = vld [vmem:[%s264 + $0x34] sm:$0xf]
    %v279 = vld [vmem:[%s264 + $0x38] sm:$0xf]
    %v280 = vld [vmem:[%s264 + $0x3c] sm:$0xf]
    %v281 = vld [vmem:[%s2 + $0x2] sm:$0x1]
    %v282 = vlaneseq
    %v283 = vshrl.u32 %v282, 7
    %v284 = vsub.s32 0, %v283
    %v285 = vrot.slane %v281, %v284
    %v302 = vunpack.c.l.b16 %v265
    %v303 = vunpack.c.l.b16 %v266
    %v304 = vunpack.c.l.b16 %v267
    %v305 = vunpack.c.l.b16 %v268
    %v306 = vunpack.c.l.b16 %v269
    %v307 = vunpack.c.l.b16 %v270
    %v308 = vunpack.c.l.b16 %v271
    %v309 = vunpack.c.l.b16 %v272
    %v310 = vunpack.c.l.b16 %v273
    %v311 = vunpack.c.l.b16 %v274
    %v312 = vunpack.c.l.b16 %v275
    %v313 = vunpack.c.l.b16 %v276
    %v314 = vunpack.c.l.b16 %v277
    %v315 = vunpack.c.l.b16 %v278
    %v316 = vunpack.c.l.b16 %v279
    %v317 = vunpack.c.l.b16 %v280
    %v318 = vpack.c.b16 %v303, %v302
    %v319 = vpack.c.b16 %v305, %v304
    %v320 = vpack.c.b16 %v307, %v306
    %v321 = vpack.c.b16 %v309, %v308
    %v322 = vpack.c.b16 %v311, %v310
    %v323 = vpack.c.b16 %v313, %v312
    %v324 = vpack.c.b16 %v315, %v314
    %v325 = vpack.c.b16 %v317, %v316
    %334 = vmatprep.subr.bf16.mxu0 0
    %335 = vmatpush1.bf16.msra.mxu0 %v318
    %336 = vmatprep.subr.bf16.mxu0 0
    %337 = vmatpush1.bf16.msra.mxu0 %v319
    %338 = vmatprep.subr.bf16.mxu0 0
    %339 = vmatpush1.bf16.msra.mxu0 %v320
    %340 = vmatprep.subr.bf16.mxu0 0
    %341 = vmatpush1.bf16.msra.mxu0 %v321
    %342 = vmatprep.subr.bf16.mxu0 0
    %343 = vmatpush1.bf16.msra.mxu0 %v322
    %344 = vmatprep.subr.bf16.mxu0 0
    %345 = vmatpush1.bf16.msra.mxu0 %v323
    %346 = vmatprep.subr.bf16.mxu0 0
    %347 = vmatpush1.bf16.msra.mxu0 %v324
    %348 = vmatprep.subr.bf16.mxu0 0
    %349 = vmatpush1.bf16.msra.mxu0 %v325
    %350 = vmatprep.subr.bf16.mxu0 0
    %351 = vmatpush1.bf16.msra.mxu0 0
    %352 = vmatprep.subr.bf16.mxu0 0
    %353 = vmatpush1.bf16.msra.mxu0 0
    %354 = vmatprep.subr.bf16.mxu0 0
    %355 = vmatpush1.bf16.msra.mxu0 0
    %356 = vmatprep.subr.bf16.mxu0 0
    %357 = vmatpush1.bf16.msra.mxu0 0
    %358 = vmatprep.subr.bf16.mxu0 0
    %359 = vmatpush1.bf16.msra.mxu0 0
    %360 = vmatprep.subr.bf16.mxu0 0
    %361 = vmatpush1.bf16.msra.mxu0 0
    %362 = vmatprep.subr.bf16.mxu0 0
    %363 = vmatpush1.bf16.msra.mxu0 0
    %364 = vmatprep.subr.bf16.mxu0 0
    %365 = vmatpush1.bf16.msra.mxu0 0
    %366 = vmatprep.mubr.bf16.mxu0 0
    %367 = vmatmul.mubr.bf16.gmra.mrb[0].mxu0 %v263
    %v368 = vpop.f32.mrb[0].mxu0
    %v369 = vadd.f32 %v285, %v368
    %v370 = vpop.f32.mrb[0].mxu0
    %v371 = vpop.f32.mrb[0].mxu0
    %v372 = vadd.f32 %v285, %v371
    %v373 = vpop.f32.mrb[0].mxu0
    %374 = vdwg.mxu0
    %375 = vst [vmem:[%s3] sm:$0xff] %v369
    %376 = vst [vmem:[%s3 + $0x8] sm:$0xff] %v372
    // Predicated region
    $region18: #{phinet_forward.1} parent=1 // pred_check
      _
    $region19: #{phinet_forward.1} parent=1 // pred_check_branch
      %378 = sbr.rel (0) target = $region21
    $region20: #{phinet_forward.1} parent=1 // pred_region
      _
    $region21: #{phinet_forward.1} parent=1 // pred_fallthru
      _
    // Predicated region
    $region22: #{phinet_forward.1} parent=1 // pred_check
      _
    $region23: #{phinet_forward.1} parent=1 // pred_check_branch
      %380 = sbr.rel (0) target = $region25
    $region24: #{phinet_forward.1} parent=1 // pred_region
      _
    $region25: #{phinet_forward.1} parent=1 // pred_fallthru
      _
    %381 = vsyncpa [#allocation3], 1

</llo_original>
